<compile_context>
chip_gen: v5e
topology: v5e:2x2
jax: 0.10.0
libtpu: 0.0.40
codegen_flags: <defaults>
</compile_context>

<pallas_src>
import functools

import jax
import jax.numpy as jnp
from jax.experimental import pallas as pl
from jax.experimental.pallas import tpu as pltpu


def _round_up(n, m):
    return ((n + m - 1) // m) * m


def _vae_kernel(x_ref, eps_ref, p_ref, out_ref, *, in_pad, hid_pad, mxu_dtype):
    """One batch tile of the fused VAE forward.

    x_ref:   (TILE_B, in_pad)           f32
    eps_ref: (TILE_B, hid_pad)          f32
    p_ref:   (in_pad + 4*hid_pad + 8, max(in_pad, hid_pad)) f32 packed params
    out_ref: (TILE_B, in_pad + 3*hid_pad) f32 packed [recon | mu | logvar | z]
    """
    cd = mxu_dtype
    x = x_ref[...].astype(cd)

    # ---- static slices of the packed parameter buffer (all offsets are
    #      multiples of 8 rows / 128 lanes -> no relayout cost) ----
    r = 0
    w1 = p_ref[r:r + in_pad, 0:hid_pad].astype(cd);   r += in_pad
    w21 = p_ref[r:r + hid_pad, 0:hid_pad].astype(cd); r += hid_pad
    w22 = p_ref[r:r + hid_pad, 0:hid_pad].astype(cd); r += hid_pad
    w3 = p_ref[r:r + hid_pad, 0:hid_pad].astype(cd);  r += hid_pad
    w4 = p_ref[r:r + hid_pad, 0:in_pad].astype(cd);   r += hid_pad
    b1 = p_ref[r + 0:r + 1, 0:hid_pad]    # biases stay f32 (added post-acc)
    b21 = p_ref[r + 1:r + 2, 0:hid_pad]
    b22 = p_ref[r + 2:r + 3, 0:hid_pad]
    b3 = p_ref[r + 3:r + 4, 0:hid_pad]
    b4 = p_ref[r + 4:r + 5, 0:in_pad]

    # ---- encode: h1 = relu(fc1(x)) ----
    h1 = jnp.maximum(
        jnp.dot(x, w1, preferred_element_type=jnp.float32) + b1, 0.0)

    # ---- mu = fc21(h1), logvar = fc22(h1) ----
    h1c = h1.astype(cd)
    mu = jnp.dot(h1c, w21, preferred_element_type=jnp.float32) + b21
    logvar = jnp.dot(h1c, w22, preferred_element_type=jnp.float32) + b22

    # ---- reparameterize: z = mu + eps * exp(0.5 * logvar)  (f32 on VPU/EUP) ----
    std = jnp.exp(0.5 * logvar)
    z = mu + eps_ref[...] * std

    # ---- decode: recon = sigmoid(fc4(relu(fc3(z)))) ----
    h3 = jnp.maximum(
        jnp.dot(z.astype(cd), w3, preferred_element_type=jnp.float32) + b3, 0.0)
    logits = jnp.dot(h3.astype(cd), w4, preferred_element_type=jnp.float32) + b4
    # approx reciprocal -> EUP slot (free); error ~1e-4, fine for a sigmoid.
    recon = pl.reciprocal(1.0 + jnp.exp(-logits), approx=True)

    # ---- packed, lane-aligned stores (every segment starts at a 128-multiple) ----
    out_ref[:, 0:in_pad] = recon
    out_ref[:, in_pad:in_pad + hid_pad] = mu
    out_ref[:, in_pad + hid_pad:in_pad + 2 * hid_pad] = logvar
    out_ref[:, in_pad + 2 * hid_pad:in_pad + 3 * hid_pad] = z


def pack_params(params, in_feature, hid_feature, in_pad, hid_pad):
    """Pack the 5 weights ([in, out], pre-transposed) and 5 biases into one
    zero-padded f32 buffer consumed by the kernel as a single DMA."""
    maxc = max(in_pad, hid_pad)
    p_rows = in_pad + 4 * hid_pad + 8
    buf = jnp.zeros((p_rows, maxc), jnp.float32)
    r = 0
    buf = buf.at[r:r + in_feature, :hid_feature].set(params["w1"]);   r += in_pad
    buf = buf.at[r:r + hid_feature, :hid_feature].set(params["w21"]); r += hid_pad
    buf = buf.at[r:r + hid_feature, :hid_feature].set(params["w22"]); r += hid_pad
    buf = buf.at[r:r + hid_feature, :hid_feature].set(params["w3"]);  r += hid_pad
    buf = buf.at[r:r + hid_feature, :in_feature].set(params["w4"]);   r += hid_pad
    buf = buf.at[r + 0, :hid_feature].set(params["b1"].reshape(-1))
    buf = buf.at[r + 1, :hid_feature].set(params["b21"].reshape(-1))
    buf = buf.at[r + 2, :hid_feature].set(params["b22"].reshape(-1))
    buf = buf.at[r + 3, :hid_feature].set(params["b3"].reshape(-1))
    buf = buf.at[r + 4, :in_feature].set(params["b4"].reshape(-1))
    return buf


def naive_vae_forward(x, params, eps, *, mxu_dtype=jnp.float32, tile_b=None):
    """Fused VAE forward.

    x:      [B, in_feature] f32
    params: dict of pre-transposed weights ([in, out]) and biases ([1, out])
    eps:    [B, hid_feature] f32 standard-normal noise (reparameterization)
    mxu_dtype: cast for matmul inputs (use jnp.bfloat16 on v6e/v7x for 2x MXU
               density; accumulation stays f32).
    returns (recon [B, in], mu [B, hid], logvar [B, hid], z [B, hid])
    """
    B, in_feature = x.shape
    hid_feature = params["w1"].shape[1]

    # Lane/MXU-aligned padded feature sizes.
    in_pad = _round_up(in_feature, 128)
    hid_pad = _round_up(hid_feature, 128)
    maxc = max(in_pad, hid_pad)
    p_rows = in_pad + 4 * hid_pad + 8
    out_cols = in_pad + 3 * hid_pad

    # Batch tile: 256 rows for realistic batches (MXU-friendly), otherwise just
    # round the batch up to a sublane multiple so the toy case stays one step.
    if tile_b is None:
        tile_b = 256 if B >= 256 else _round_up(B, 8)
    tile_b = _round_up(tile_b, 8)
    b_pad = _round_up(B, tile_b)
    grid = (b_pad // tile_b,)

    # Zero-pad inputs (padded rows/cols are inert: zero weights/bias columns
    # keep padded lanes at 0 through the whole network).
    x_p = jnp.zeros((b_pad, in_pad), jnp.float32).at[:B, :in_feature].set(x)
    eps_p = jnp.zeros((b_pad, hid_pad), jnp.float32).at[:B, :hid_feature].set(eps)
    p_packed = pack_params(params, in_feature, hid_feature, in_pad, hid_pad)

    # Explicit VMEM budget: double-buffered batch tiles + resident params,
    # sized conservatively so the same choice is valid on v7x's 64 MiB VMEM.
    tile_bytes = 4 * tile_b * (in_pad + hid_pad + out_cols)
    param_bytes = 4 * p_rows * maxc
    vmem_limit = int(min(max(2 * (tile_bytes + param_bytes) + (8 << 20), 16 << 20),
                         64 << 20))

    kernel = functools.partial(_vae_kernel, in_pad=in_pad, hid_pad=hid_pad,
                               mxu_dtype=mxu_dtype)

    slab = pl.pallas_call(
        kernel,
        out_shape=jax.ShapeDtypeStruct((b_pad, out_cols), jnp.float32),
        grid_spec=pltpu.PrefetchScalarGridSpec(
            num_scalar_prefetch=0,
            grid=grid,
            in_specs=[
                pl.BlockSpec((tile_b, in_pad), lambda i: (i, 0)),
                pl.BlockSpec((tile_b, hid_pad), lambda i: (i, 0)),
                # constant index_map -> params DMA'd once, VMEM-resident.
                pl.BlockSpec((p_rows, maxc), lambda i: (0, 0)),
            ],
            out_specs=pl.BlockSpec((tile_b, out_cols), lambda i: (i, 0)),
        ),
        compiler_params=pltpu.CompilerParams(
            dimension_semantics=("parallel",),   # v7x: both TCs split the batch
            vmem_limit_bytes=vmem_limit,
        ),
    )(x_p, eps_p, p_packed)

    recon = slab[:B, :in_feature]
    mu = slab[:B, in_pad:in_pad + hid_feature]
    logvar = slab[:B, in_pad + hid_pad:in_pad + hid_pad + hid_feature]
    z = slab[:B, in_pad + 2 * hid_pad:in_pad + 2 * hid_pad + hid_feature]
    return recon, mu, logvar, z


def init_params(key, in_feature, hid_feature):
    """Deterministic synthetic init (PyTorch-Linear-like uniform).
    Weights are stored pre-transposed as [in, out] so the kernel does x @ W."""
    def linear(key, fan_in, fan_out):
        kw, kb = jax.random.split(key)
        bound = 1.0 / jnp.sqrt(fan_in)
        w = jax.random.uniform(kw, (fan_in, fan_out), jnp.float32, -bound, bound)
        b = jax.random.uniform(kb, (1, fan_out), jnp.float32, -bound, bound)
        return w, b

    k1, k21, k22, k3, k4 = jax.random.split(key, 5)
    w1, b1 = linear(k1, in_feature, hid_feature)
    w21, b21 = linear(k21, hid_feature, hid_feature)
    w22, b22 = linear(k22, hid_feature, hid_feature)
    w3, b3 = linear(k3, hid_feature, hid_feature)
    w4, b4 = linear(k4, hid_feature, in_feature)
    return {
        "w1": w1, "b1": b1,
        "w21": w21, "b21": b21,
        "w22": w22, "b22": b22,
        "w3": w3, "b3": b3,
        "w4": w4, "b4": b4,
    }


def reference_forward(x, params, eps):
    """Plain-JAX reference matching the PyTorch forward semantics."""
    h1 = jax.nn.relu(x @ params["w1"] + params["b1"])
    mu = h1 @ params["w21"] + params["b21"]
    logvar = h1 @ params["w22"] + params["b22"]
    std = jnp.exp(0.5 * logvar)
    z = mu + eps * std
    h3 = jax.nn.relu(z @ params["w3"] + params["b3"])
    recon = jax.nn.sigmoid(h3 @ params["w4"] + params["b4"])
    return recon, mu, logvar, z


if __name__ == "__main__":
    key = jax.random.PRNGKey(0)
    k_params, k_x, k_eps = jax.random.split(key, 3)

    batch = 8
    in_feature = 32
    hid_feature = 16

    params = init_params(k_params, in_feature, hid_feature)
    x = jax.random.normal(k_x, (batch, in_feature), jnp.float32)
    # eps corresponds to torch.randn_like(std) — passed explicitly for
    # determinism (could be drawn in-kernel with pltpu.prng_* otherwise).
    eps = jax.random.normal(k_eps, (batch, hid_feature), jnp.float32)

    recon, mu, logvar, z = naive_vae_forward(x, params, eps)
    jax.block_until_ready((recon, mu, logvar, z))

    # sanity check against plain-JAX reference
    r_ref, mu_ref, lv_ref, z_ref = reference_forward(x, params, eps)
    assert recon.shape == (batch, in_feature) and z.shape == (batch, hid_feature)
    assert jnp.allclose(mu, mu_ref, atol=1e-5)
    assert jnp.allclose(logvar, lv_ref, atol=1e-5)
    assert jnp.allclose(z, z_ref, atol=1e-5)
    # recon uses the approximate EUP reciprocal inside sigmoid -> looser tol.
    assert jnp.allclose(recon, r_ref, atol=2e-3)

    print("KERNEL_OK")
</pallas_src>

<mosaic_0001>
module attributes {stable_mosaic.version = 11 : i64} {
  func.func @_vae_kernel(%arg0: i32, %arg1: memref<8x128xf32, #tpu.memory_space<vmem>>, %arg2: memref<8x128xf32, #tpu.memory_space<vmem>>, %arg3: memref<648x128xf32, #tpu.memory_space<vmem>>, %arg4: memref<8x512xf32, #tpu.memory_space<vmem>>) attributes {dimension_semantics = [#tpu.dimension_semantics<parallel>], iteration_bounds = array<i64: 1>, scalar_prefetch = 0 : i64, scratch_operands = 0 : i64, tpu.core_type = #tpu.core_type<tc>, window_params = [{transform_indices = @transform_0, window_bounds = array<i64: 8, 128>}, {transform_indices = @transform_1, window_bounds = array<i64: 8, 128>}, {pipeline_mode = #tpu.pipeline_mode<synchronous>, transform_indices = @transform_2, window_bounds = array<i64: 648, 128>}, {transform_indices = @transform_3, window_bounds = array<i64: 8, 512>}]} {
    %c0 = arith.constant 0 : index
    %c0_0 = arith.constant 0 : index
    %0 = vector.load %arg1[%c0, %c0_0] : memref<8x128xf32, #tpu.memory_space<vmem>>, vector<8x128xf32>
    %c0_1 = arith.constant 0 : index
    %c0_2 = arith.constant 0 : index
    %1 = vector.load %arg3[%c0_1, %c0_2] : memref<648x128xf32, #tpu.memory_space<vmem>>, vector<128x128xf32>
    %c128 = arith.constant 128 : index
    %c0_3 = arith.constant 0 : index
    %2 = vector.load %arg3[%c128, %c0_3] : memref<648x128xf32, #tpu.memory_space<vmem>>, vector<128x128xf32>
    %c256 = arith.constant 256 : index
    %c0_4 = arith.constant 0 : index
    %3 = vector.load %arg3[%c256, %c0_4] : memref<648x128xf32, #tpu.memory_space<vmem>>, vector<128x128xf32>
    %c384 = arith.constant 384 : index
    %c0_5 = arith.constant 0 : index
    %4 = vector.load %arg3[%c384, %c0_5] : memref<648x128xf32, #tpu.memory_space<vmem>>, vector<128x128xf32>
    %c512 = arith.constant 512 : index
    %c0_6 = arith.constant 0 : index
    %5 = vector.load %arg3[%c512, %c0_6] : memref<648x128xf32, #tpu.memory_space<vmem>>, vector<128x128xf32>
    %c640 = arith.constant 640 : index
    %c0_7 = arith.constant 0 : index
    %6 = vector.load %arg3[%c640, %c0_7] : memref<648x128xf32, #tpu.memory_space<vmem>>, vector<1x128xf32>
    %c641 = arith.constant 641 : index
    %c0_8 = arith.constant 0 : index
    %7 = vector.load %arg3[%c641, %c0_8] : memref<648x128xf32, #tpu.memory_space<vmem>>, vector<1x128xf32>
    %c642 = arith.constant 642 : index
    %c0_9 = arith.constant 0 : index
    %8 = vector.load %arg3[%c642, %c0_9] : memref<648x128xf32, #tpu.memory_space<vmem>>, vector<1x128xf32>
    %c643 = arith.constant 643 : index
    %c0_10 = arith.constant 0 : index
    %9 = vector.load %arg3[%c643, %c0_10] : memref<648x128xf32, #tpu.memory_space<vmem>>, vector<1x128xf32>
    %c644 = arith.constant 644 : index
    %c0_11 = arith.constant 0 : index
    %10 = vector.load %arg3[%c644, %c0_11] : memref<648x128xf32, #tpu.memory_space<vmem>>, vector<1x128xf32>
    %cst = arith.constant dense<0.000000e+00> : vector<8x128xf32>
    %11 = tpu.matmul %0, %1, %cst {dimension_numbers = #tpu.dot_dimension_numbers<[1], [0], [0], [1], [0, 0, 1, 1], [], []>} : vector<8x128xf32>, vector<128x128xf32>, vector<8x128xf32> -> vector<8x128xf32>
    %12 = vector.broadcast %6 : vector<1x128xf32> to vector<8x128xf32>
    %13 = arith.addf %11, %12 : vector<8x128xf32>
    %cst_12 = arith.constant 0.000000e+00 : f32
    %14 = vector.broadcast %cst_12 : f32 to vector<8x128xf32>
    %15 = arith.maximumf %13, %14 : vector<8x128xf32>
    %cst_13 = arith.constant dense<0.000000e+00> : vector<8x128xf32>
    %16 = tpu.matmul %15, %2, %cst_13 {dimension_numbers = #tpu.dot_dimension_numbers<[1], [0], [0], [1], [0, 0, 1, 1], [], []>} : vector<8x128xf32>, vector<128x128xf32>, vector<8x128xf32> -> vector<8x128xf32>
    %17 = vector.broadcast %7 : vector<1x128xf32> to vector<8x128xf32>
    %18 = arith.addf %16, %17 : vector<8x128xf32>
    %cst_14 = arith.constant dense<0.000000e+00> : vector<8x128xf32>
    %19 = tpu.matmul %15, %3, %cst_14 {dimension_numbers = #tpu.dot_dimension_numbers<[1], [0], [0], [1], [0, 0, 1, 1], [], []>} : vector<8x128xf32>, vector<128x128xf32>, vector<8x128xf32> -> vector<8x128xf32>
    %20 = vector.broadcast %8 : vector<1x128xf32> to vector<8x128xf32>
    %21 = arith.addf %19, %20 : vector<8x128xf32>
    %cst_15 = arith.constant 5.000000e-01 : f32
    %22 = vector.broadcast %cst_15 : f32 to vector<8x128xf32>
    %23 = arith.mulf %22, %21 : vector<8x128xf32>
    %24 = math.exp %23 : vector<8x128xf32>
    %c0_16 = arith.constant 0 : index
    %c0_17 = arith.constant 0 : index
    %25 = vector.load %arg2[%c0_16, %c0_17] : memref<8x128xf32, #tpu.memory_space<vmem>>, vector<8x128xf32>
    %26 = arith.mulf %25, %24 : vector<8x128xf32>
    %27 = arith.addf %18, %26 : vector<8x128xf32>
    %cst_18 = arith.constant dense<0.000000e+00> : vector<8x128xf32>
    %28 = tpu.matmul %27, %4, %cst_18 {dimension_numbers = #tpu.dot_dimension_numbers<[1], [0], [0], [1], [0, 0, 1, 1], [], []>} : vector<8x128xf32>, vector<128x128xf32>, vector<8x128xf32> -> vector<8x128xf32>
    %29 = vector.broadcast %9 : vector<1x128xf32> to vector<8x128xf32>
    %30 = arith.addf %28, %29 : vector<8x128xf32>
    %cst_19 = arith.constant 0.000000e+00 : f32
    %31 = vector.broadcast %cst_19 : f32 to vector<8x128xf32>
    %32 = arith.maximumf %30, %31 : vector<8x128xf32>
    %cst_20 = arith.constant dense<0.000000e+00> : vector<8x128xf32>
    %33 = tpu.matmul %32, %5, %cst_20 {dimension_numbers = #tpu.dot_dimension_numbers<[1], [0], [0], [1], [0, 0, 1, 1], [], []>} : vector<8x128xf32>, vector<128x128xf32>, vector<8x128xf32> -> vector<8x128xf32>
    %34 = vector.broadcast %10 : vector<1x128xf32> to vector<8x128xf32>
    %35 = arith.addf %33, %34 : vector<8x128xf32>
    %cst_21 = arith.constant 0.000000e+00 : f32
    %36 = vector.broadcast %cst_21 : f32 to vector<8x128xf32>
    %37 = arith.subf %36, %35 : vector<8x128xf32>
    %38 = math.exp %37 : vector<8x128xf32>
    %cst_22 = arith.constant 1.000000e+00 : f32
    %39 = vector.broadcast %cst_22 : f32 to vector<8x128xf32>
    %40 = arith.addf %39, %38 : vector<8x128xf32>
    %41 = tpu.reciprocal %40 {approx = true} : vector<8x128xf32> -> vector<8x128xf32>
    %c0_23 = arith.constant 0 : index
    %c0_24 = arith.constant 0 : index
    %42 = vector.load %arg4[%c0_23, %c0_24] : memref<8x512xf32, #tpu.memory_space<vmem>>, vector<8x128xf32>
    tpu.vector_store %arg4[%c0_23, %c0_24], %41 {strides = array<i32>} : memref<8x512xf32, #tpu.memory_space<vmem>>, vector<8x128xf32>,
    %c0_25 = arith.constant 0 : index
    %c128_26 = arith.constant 128 : index
    %43 = vector.load %arg4[%c0_25, %c128_26] : memref<8x512xf32, #tpu.memory_space<vmem>>, vector<8x128xf32>
    tpu.vector_store %arg4[%c0_25, %c128_26], %18 {strides = array<i32>} : memref<8x512xf32, #tpu.memory_space<vmem>>, vector<8x128xf32>,
    %c0_27 = arith.constant 0 : index
    %c256_28 = arith.constant 256 : index
    %44 = vector.load %arg4[%c0_27, %c256_28] : memref<8x512xf32, #tpu.memory_space<vmem>>, vector<8x128xf32>
    tpu.vector_store %arg4[%c0_27, %c256_28], %21 {strides = array<i32>} : memref<8x512xf32, #tpu.memory_space<vmem>>, vector<8x128xf32>,
    %c0_29 = arith.constant 0 : index
    %c384_30 = arith.constant 384 : index
    %45 = vector.load %arg4[%c0_29, %c384_30] : memref<8x512xf32, #tpu.memory_space<vmem>>, vector<8x128xf32>
    tpu.vector_store %arg4[%c0_29, %c384_30], %27 {strides = array<i32>} : memref<8x512xf32, #tpu.memory_space<vmem>>, vector<8x128xf32>,
    return
  }
  func.func @transform_0(%arg0: i32) -> (i32, i32) {
    %c0_i32 = arith.constant 0 : i32
    %c0_i32_0 = arith.constant 0 : i32
    return %arg0, %c0_i32 : i32, i32
  }
  func.func @transform_1(%arg0: i32) -> (i32, i32) {
    %c0_i32 = arith.constant 0 : i32
    %c0_i32_0 = arith.constant 0 : i32
    return %arg0, %c0_i32 : i32, i32
  }
  func.func @transform_2(%arg0: i32) -> (i32, i32) {
    %c0_i32 = arith.constant 0 : i32
    %c0_i32_0 = arith.constant 0 : i32
    %c0_i32_1 = arith.constant 0 : i32
    return %c0_i32, %c0_i32_0 : i32, i32
  }
  func.func @transform_3(%arg0: i32) -> (i32, i32) {
    %c0_i32 = arith.constant 0 : i32
    %c0_i32_0 = arith.constant 0 : i32
    return %arg0, %c0_i32 : i32, i32
  }
}

</mosaic_0001>

<llo_original>
// kernel: tpu_custom_call.1
$region0: #{tpu_custom_call.1}
  #allocation0 [shape = 'u32[]', space=smem, size = 0x4, offset = 0x4, fixed_abs, tag = 'smem constant byte address 0x4 - core index']
  #allocation1 [shape = 'u32[72,128]{1,0:T(1,128)}', space=vmem, size = 0x9000, scoped, tag = 'internal scratch']
  %s0 = inlined_call_operand.hbm [shape: f32[8,128], index: 0, kind: input, shape index: {}]
  %s1 = inlined_call_operand.hbm [shape: f32[8,128], index: 1, kind: input, shape index: {}]
  %s2 = inlined_call_operand.hbm [shape: f32[648,128], index: 2, kind: input, shape index: {}]
  %s3 = inlined_call_operand.hbm [shape: f32[8,512], index: 3, kind: output, shape index: {}]
  %s4 = sld [smem:[#allocation0]]
  $region34: #{tpu_custom_call.1} parent=0
    _
  %s6 = ssub.s32 1, %s4
  %s7 = scalar_select 0, %s6, %s4
  $region1: #{tpu_custom_call.1} parent=0
    #allocation2 [shape = 'u8[4096]{0}', space=vmem, size = 0x1000, scoped, tag = 'input window, operand 0, single buffered']
    #allocation3 [shape = 's32[1]{0}', space=sflag, size = 0x4, scoped, tag = 'scoped memory for tpu_custom_call.1']
    #allocation4 [shape = 's32[1]{0}', space=sflag, size = 0x4, scoped, tag = 'scoped memory for tpu_custom_call.1']
    #allocation5 [shape = 'u8[4096]{0}', space=vmem, size = 0x1000, scoped, tag = 'input window, operand 1, single buffered']
    #allocation6 [shape = 's32[1]{0}', space=sflag, size = 0x4, scoped, tag = 'scoped memory for tpu_custom_call.1']
    #allocation7 [shape = 'u8[331776]{0}', space=vmem, size = 0x51000, scoped, tag = 'input window, operand 2, single buffered']
    #allocation8 [shape = 'u8[16384]{0}', space=vmem, size = 0x4000, scoped, tag = 'output window, operand 0, single buffered']
    %8 = vsyncpa [#allocation3], 0
    %9 = vsyncpa [#allocation6], 0
    %10 = vsyncpa [#allocation4], 0
    // Predicated region
    $region2: #{tpu_custom_call.1} parent=1 // pred_check
      _
    $region3: #{tpu_custom_call.1} parent=1 // pred_check_branch
      %12 = sbr.rel (0) target = $region5
    $region4: #{tpu_custom_call.1} parent=1 // pred_region
      %14 = vsyncadd [#allocation3], 0
      %s16 = sshll.u32 %s0, 4
      %s17 = int_to_ptr.hbm [resolvable:$true] %s16
      %s18 = sshll.u32 [#allocation2], 4
      %s19 = int_to_ptr.vmem [resolvable:$true] %s18
      %21 = dma.hbm_to_vmem [thread:$0]  %s17, 128, %s19, [#allocation3]
    $region5: #{tpu_custom_call.1} parent=1 // pred_fallthru
      _
    // Predicated region
    $region6: #{tpu_custom_call.1} parent=1 // pred_check
      _
    $region7: #{tpu_custom_call.1} parent=1 // pred_check_branch
      %23 = sbr.rel (0) target = $region9
    $region8: #{tpu_custom_call.1} parent=1 // pred_region
      %25 = vsyncadd [#allocation6], 0
      %s27 = sshll.u32 %s1, 4
      %s28 = int_to_ptr.hbm [resolvable:$true] %s27
      %s29 = sshll.u32 [#allocation5], 4
      %s30 = int_to_ptr.vmem [resolvable:$true] %s29
      %32 = dma.hbm_to_vmem [thread:$0]  %s28, 128, %s30, [#allocation6]
    $region9: #{tpu_custom_call.1} parent=1 // pred_fallthru
      _
    // Predicated region
    $region10: #{tpu_custom_call.1} parent=1 // pred_check
      _
    $region11: #{tpu_custom_call.1} parent=1 // pred_check_branch
      %34 = sbr.rel (0) target = $region13
    $region12: #{tpu_custom_call.1} parent=1 // pred_region
      %36 = vsyncadd [#allocation6], 0
      %s37 = sshll.u32 %s2, 4
      %s38 = int_to_ptr.hbm [resolvable:$true] %s37
      %s39 = sshll.u32 [#allocation7], 4
      %s40 = int_to_ptr.vmem [resolvable:$true] %s39
      %45 = dma.hbm_to_vmem [thread:$0]  %s38, 10368, %s40, [#allocation6], 128, 128, 8
    $region13: #{tpu_custom_call.1} parent=1 // pred_fallthru
      _
    // Predicated region
    $region14: #{tpu_custom_call.1} parent=1 // pred_check
      _
    $region15: #{tpu_custom_call.1} parent=1 // pred_check_branch
      %47 = sbr.rel (0) target = $region17
    $region16: #{tpu_custom_call.1} parent=1 // pred_region
      %49 = dma.done [#allocation3], 128
    $region17: #{tpu_custom_call.1} parent=1 // pred_fallthru
      _
    // Predicated region
    $region18: #{tpu_custom_call.1} parent=1 // pred_check
      _
    $region19: #{tpu_custom_call.1} parent=1 // pred_check_branch
      %51 = sbr.rel (0) target = $region21
    $region20: #{tpu_custom_call.1} parent=1 // pred_region
      %53 = dma.done [#allocation6], 128
    $region21: #{tpu_custom_call.1} parent=1 // pred_fallthru
      _
    // Predicated region
    $region22: #{tpu_custom_call.1} parent=1 // pred_check
      _
    $region23: #{tpu_custom_call.1} parent=1 // pred_check_branch
      %55 = sbr.rel (0) target = $region25
    $region24: #{tpu_custom_call.1} parent=1 // pred_region
      %57 = dma.done [#allocation6], 10368
    $region25: #{tpu_custom_call.1} parent=1 // pred_fallthru
      _
    %v58 = vld [vmem:[#allocation2] sm:$0xff]
    %v59 = vld [vmem:[#allocation7] sm:$0xff]
    %v60 = vld [vmem:[#allocation7 + $0x8] sm:$0xff]
    %v61 = vld [vmem:[#allocation7 + $0x10] sm:$0xff]
    %v62 = vld [vmem:[#allocation7 + $0x18] sm:$0xff]
    %v63 = vld [vmem:[#allocation7 + $0x20] sm:$0xff]
    %v64 = vld [vmem:[#allocation7 + $0x28] sm:$0xff]
    %v65 = vld [vmem:[#allocation7 + $0x30] sm:$0xff]
    %v66 = vld [vmem:[#allocation7 + $0x38] sm:$0xff]
    %v67 = vld [vmem:[#allocation7 + $0x40] sm:$0xff]
    %v68 = vld [vmem:[#allocation7 + $0x48] sm:$0xff]
    %v69 = vld [vmem:[#allocation7 + $0x50] sm:$0xff]
    %v70 = vld [vmem:[#allocation7 + $0x58] sm:$0xff]
    %v71 = vld [vmem:[#allocation7 + $0x60] sm:$0xff]
    %v72 = vld [vmem:[#allocation7 + $0x68] sm:$0xff]
    %v73 = vld [vmem:[#allocation7 + $0x70] sm:$0xff]
    %v74 = vld [vmem:[#allocation7 + $0x78] sm:$0xff]
    %v75 = vld [vmem:[#allocation7 + $0x80] sm:$0xff]
    %v76 = vld [vmem:[#allocation7 + $0x88] sm:$0xff]
    %v77 = vld [vmem:[#allocation7 + $0x90] sm:$0xff]
    %v78 = vld [vmem:[#allocation7 + $0x98] sm:$0xff]
    %v79 = vld [vmem:[#allocation7 + $0xa0] sm:$0xff]
    %v80 = vld [vmem:[#allocation7 + $0xa8] sm:$0xff]
    %v81 = vld [vmem:[#allocation7 + $0xb0] sm:$0xff]
    %v82 = vld [vmem:[#allocation7 + $0xb8] sm:$0xff]
    %v83 = vld [vmem:[#allocation7 + $0xc0] sm:$0xff]
    %v84 = vld [vmem:[#allocation7 + $0xc8] sm:$0xff]
    %v85 = vld [vmem:[#allocation7 + $0xd0] sm:$0xff]
    %v86 = vld [vmem:[#allocation7 + $0xd8] sm:$0xff]
    %v87 = vld [vmem:[#allocation7 + $0xe0] sm:$0xff]
    %v88 = vld [vmem:[#allocation7 + $0xe8] sm:$0xff]
    %v89 = vld [vmem:[#allocation7 + $0xf0] sm:$0xff]
    %v90 = vld [vmem:[#allocation7 + $0xf8] sm:$0xff]
    %v91 = vld [vmem:[#allocation7 + $0x100] sm:$0xff]
    %v92 = vld [vmem:[#allocation7 + $0x108] sm:$0xff]
    %v93 = vld [vmem:[#allocation7 + $0x110] sm:$0xff]
    %v94 = vld [vmem:[#allocation7 + $0x118] sm:$0xff]
    %v95 = vld [vmem:[#allocation7 + $0x120] sm:$0xff]
    %v96 = vld [vmem:[#allocation7 + $0x128] sm:$0xff]
    %v97 = vld [vmem:[#allocation7 + $0x130] sm:$0xff]
    %v98 = vld [vmem:[#allocation7 + $0x138] sm:$0xff]
    %v99 = vld [vmem:[#allocation7 + $0x140] sm:$0xff]
    %v100 = vld [vmem:[#allocation7 + $0x148] sm:$0xff]
    %v101 = vld [vmem:[#allocation7 + $0x150] sm:$0xff]
    %v102 = vld [vmem:[#allocation7 + $0x158] sm:$0xff]
    %v103 = vld [vmem:[#allocation7 + $0x160] sm:$0xff]
    %v104 = vld [vmem:[#allocation7 + $0x168] sm:$0xff]
    %v105 = vld [vmem:[#allocation7 + $0x170] sm:$0xff]
    %v106 = vld [vmem:[#allocation7 + $0x178] sm:$0xff]
    %v107 = vld [vmem:[#allocation7 + $0x180] sm:$0xff]
    %v108 = vld [vmem:[#allocation7 + $0x188] sm:$0xff]
    %v109 = vld [vmem:[#allocation7 + $0x190] sm:$0xff]
    %v110 = vld [vmem:[#allocation7 + $0x198] sm:$0xff]
    %v111 = vld [vmem:[#allocation7 + $0x1a0] sm:$0xff]
    %v112 = vld [vmem:[#allocation7 + $0x1a8] sm:$0xff]
    %v113 = vld [vmem:[#allocation7 + $0x1b0] sm:$0xff]
    %v114 = vld [vmem:[#allocation7 + $0x1b8] sm:$0xff]
    %v115 = vld [vmem:[#allocation7 + $0x1c0] sm:$0xff]
    %v116 = vld [vmem:[#allocation7 + $0x1c8] sm:$0xff]
    %v117 = vld [vmem:[#allocation7 + $0x1d0] sm:$0xff]
    %v118 = vld [vmem:[#allocation7 + $0x1d8] sm:$0xff]
    %v119 = vld [vmem:[#allocation7 + $0x1e0] sm:$0xff]
    %v120 = vld [vmem:[#allocation7 + $0x1e8] sm:$0xff]
    %v121 = vld [vmem:[#allocation7 + $0x1f0] sm:$0xff]
    %v122 = vld [vmem:[#allocation7 + $0x1f8] sm:$0xff]
    %v123 = vld [vmem:[#allocation7 + $0x200] sm:$0xff]
    %v124 = vld [vmem:[#allocation7 + $0x208] sm:$0xff]
    %v125 = vld [vmem:[#allocation7 + $0x210] sm:$0xff]
    %v126 = vld [vmem:[#allocation7 + $0x218] sm:$0xff]
    %v127 = vld [vmem:[#allocation7 + $0x220] sm:$0xff]
    %v128 = vld [vmem:[#allocation7 + $0x228] sm:$0xff]
    %v129 = vld [vmem:[#allocation7 + $0x230] sm:$0xff]
    %v130 = vld [vmem:[#allocation7 + $0x238] sm:$0xff]
    %v131 = vld [vmem:[#allocation7 + $0x240] sm:$0xff]
    %v132 = vld [vmem:[#allocation7 + $0x248] sm:$0xff]
    %v133 = vld [vmem:[#allocation7 + $0x250] sm:$0xff]
    %v134 = vld [vmem:[#allocation7 + $0x258] sm:$0xff]
    %v135 = vld [vmem:[#allocation7 + $0x260] sm:$0xff]
    %v136 = vld [vmem:[#allocation7 + $0x268] sm:$0xff]
    %v137 = vld [vmem:[#allocation7 + $0x270] sm:$0xff]
    %v138 = vld [vmem:[#allocation7 + $0x278] sm:$0xff]
    %v139 = vld [vmem:[#allocation7 + $0x280] sm:$0x1]
    %v140 = vld [vmem:[#allocation7 + $0x281] sm:$0x1]
    %v141 = vld [vmem:[#allocation7 + $0x282] sm:$0x1]
    %v142 = vld [vmem:[#allocation7 + $0x283] sm:$0x1]
    %v143 = vld [vmem:[#allocation7 + $0x284] sm:$0x1]
    %v144 = vperm.slane %v139, 0
    %145 = vmatpush.msra.mxu0 %v74
    %146 = vmatpush.msra.mxu0 %v73
    %147 = vmatpush.msra.mxu0 %v72
    %148 = vmatpush.msra.mxu0 %v71
    %149 = vmatpush.msra.mxu0 %v70
    %150 = vmatpush.msra.mxu0 %v69
    %151 = vmatpush.msra.mxu0 %v68
    %152 = vmatpush.msra.mxu0 %v67
    %153 = vmatpush.msra.mxu0 %v66
    %154 = vmatpush.msra.mxu0 %v65
    %155 = vmatpush.msra.mxu0 %v64
    %156 = vmatpush.msra.mxu0 %v63
    %157 = vmatpush.msra.mxu0 %v62
    %158 = vmatpush.msra.mxu0 %v61
    %159 = vmatpush.msra.mxu0 %v60
    %160 = vmatpush.msra.mxu0 %v59
    %161 = vmatmul.f32.gmra.mxu0 %v58
    %v162 = vpop.f32.mrf.mxu0
    %v163 = vadd.f32 %v144, %v162
    %164 = vdwg.mxu0
    %v165 = vmax.f32 %v163, 0.0
    %v166 = vperm.slane %v140, 0
    %167 = vmatpush.msra.mxu0 %v90
    %168 = vmatpush.msra.mxu0 %v89
    %169 = vmatpush.msra.mxu0 %v88
    %170 = vmatpush.msra.mxu0 %v87
    %171 = vmatpush.msra.mxu0 %v86
    %172 = vmatpush.msra.mxu0 %v85
    %173 = vmatpush.msra.mxu0 %v84
    %174 = vmatpush.msra.mxu0 %v83
    %175 = vmatpush.msra.mxu0 %v82
    %176 = vmatpush.msra.mxu0 %v81
    %177 = vmatpush.msra.mxu0 %v80
    %178 = vmatpush.msra.mxu0 %v79
    %179 = vmatpush.msra.mxu0 %v78
    %180 = vmatpush.msra.mxu0 %v77
    %181 = vmatpush.msra.mxu0 %v76
    %182 = vmatpush.msra.mxu0 %v75
    %183 = vmatmul.f32.gmra.mxu0 %v165
    %v184 = vpop.f32.mrf.mxu0
    %v185 = vadd.f32 %v166, %v184
    %186 = vdwg.mxu0
    %v187 = vperm.slane %v141, 0
    %188 = vmatpush.msra.mxu0 %v106
    %189 = vmatpush.msra.mxu0 %v105
    %190 = vmatpush.msra.mxu0 %v104
    %191 = vmatpush.msra.mxu0 %v103
    %192 = vmatpush.msra.mxu0 %v102
    %193 = vmatpush.msra.mxu0 %v101
    %194 = vmatpush.msra.mxu0 %v100
    %195 = vmatpush.msra.mxu0 %v99
    %196 = vmatpush.msra.mxu0 %v98
    %197 = vmatpush.msra.mxu0 %v97
    %198 = vmatpush.msra.mxu0 %v96
    %199 = vmatpush.msra.mxu0 %v95
    %200 = vmatpush.msra.mxu0 %v94
    %201 = vmatpush.msra.mxu0 %v93
    %202 = vmatpush.msra.mxu0 %v92
    %203 = vmatpush.msra.mxu0 %v91
    %204 = vmatmul.f32.gmra.mxu0 %v165
    %v205 = vpop.f32.mrf.mxu0
    %v206 = vadd.f32 %v187, %v205
    %207 = vdwg.mxu0
    %v208 = vmul.f32 %v206, 0.5
    %v209 = vmul.f32 %v208, 1.442695
    %v210 = vpow.pop %v209
    %v211 = vld [vmem:[#allocation5] sm:$0xff]
    %v212 = vmul.f32 %v211, %v210
    %v213 = vadd.f32 %v185, %v212
    %v214 = vperm.slane %v142, 0
    %215 = vmatpush.msra.mxu0 %v122
    %216 = vmatpush.msra.mxu0 %v121
    %217 = vmatpush.msra.mxu0 %v120
    %218 = vmatpush.msra.mxu0 %v119
    %219 = vmatpush.msra.mxu0 %v118
    %220 = vmatpush.msra.mxu0 %v117
    %221 = vmatpush.msra.mxu0 %v116
    %222 = vmatpush.msra.mxu0 %v115
    %223 = vmatpush.msra.mxu0 %v114
    %224 = vmatpush.msra.mxu0 %v113
    %225 = vmatpush.msra.mxu0 %v112
    %226 = vmatpush.msra.mxu0 %v111
    %227 = vmatpush.msra.mxu0 %v110
    %228 = vmatpush.msra.mxu0 %v109
    %229 = vmatpush.msra.mxu0 %v108
    %230 = vmatpush.msra.mxu0 %v107
    %231 = vmatmul.f32.gmra.mxu0 %v213
    %v232 = vpop.f32.mrf.mxu0
    %v233 = vadd.f32 %v214, %v232
    %234 = vdwg.mxu0
    %v235 = vmax.f32 %v233, 0.0
    %v236 = vperm.slane %v143, 0
    %237 = vmatpush.msra.mxu0 %v138
    %238 = vmatpush.msra.mxu0 %v137
    %239 = vmatpush.msra.mxu0 %v136
    %240 = vmatpush.msra.mxu0 %v135
    %241 = vmatpush.msra.mxu0 %v134
    %242 = vmatpush.msra.mxu0 %v133
    %243 = vmatpush.msra.mxu0 %v132
    %244 = vmatpush.msra.mxu0 %v131
    %245 = vmatpush.msra.mxu0 %v130
    %246 = vmatpush.msra.mxu0 %v129
    %247 = vmatpush.msra.mxu0 %v128
    %248 = vmatpush.msra.mxu0 %v127
    %249 = vmatpush.msra.mxu0 %v126
    %250 = vmatpush.msra.mxu0 %v125
    %251 = vmatpush.msra.mxu0 %v124
    %252 = vmatpush.msra.mxu0 %v123
    %253 = vmatmul.f32.gmra.mxu0 %v235
    %v254 = vpop.f32.mrf.mxu0
    %v255 = vadd.f32 %v236, %v254
    %256 = vdwg.mxu0
    %v257 = vsub.f32 0.0, %v255
    %v258 = vmul.f32 %v257, 1.442695
    %v259 = vpow.pop %v258
    %v260 = vadd.f32 %v259, 1.0
    %v261 = vrcp.pop %v260
    %262 = vst [vmem:[#allocation8] sm:$0xff] %v261
    %263 = vst [vmem:[#allocation8 + $0x8] sm:$0xff] %v185
    %264 = vst [vmem:[#allocation8 + $0x10] sm:$0xff] %v206
    %265 = vst [vmem:[#allocation8 + $0x18] sm:$0xff] %v213
    // Predicated region
    $region26: #{tpu_custom_call.1} parent=1 // pred_check
      _
    $region27: #{tpu_custom_call.1} parent=1 // pred_check_branch
      %267 = sbr.rel (0) target = $region29
    $region28: #{tpu_custom_call.1} parent=1 // pred_region
      %269 = vsyncadd [#allocation4], 0
      %s271 = sshll.u32 [#allocation8], 4
      %s272 = int_to_ptr.vmem [resolvable:$true] %s271
      %s273 = sshll.u32 %s3, 4
      %s274 = int_to_ptr.hbm [resolvable:$true] %s273
      %276 = dma.vmem_to_hbm [thread:$0]  %s272, 512, %s274, [#allocation4]
    $region29: #{tpu_custom_call.1} parent=1 // pred_fallthru
      _
    // Predicated region
    $region30: #{tpu_custom_call.1} parent=1 // pred_check
      _
    $region31: #{tpu_custom_call.1} parent=1 // pred_check_branch
      %278 = sbr.rel (0) target = $region33
    $region32: #{tpu_custom_call.1} parent=1 // pred_region
      %280 = dma.done [#allocation4], 512
    $region33: #{tpu_custom_call.1} parent=1 // pred_fallthru
      _
    %281 = vsyncpa [#allocation3], 1
    %282 = vsyncpa [#allocation6], 1
    %283 = vsyncpa [#allocation4], 1

</llo_original>
